<compile_context>
chip_gen: v7x
topology: tpu7x:2x2x1
jax: 0.10.0
libtpu: 0.0.40
codegen_flags: <defaults>
</compile_context>

<pallas_src>
import functools

import jax
import jax.numpy as jnp
import numpy as np
from jax.experimental import pallas as pl
from jax.experimental.pallas import tpu as pltpu

NUM_TIMESTEPS = 1000  # config.num_diffusion_timesteps (only T is used in forward)


def _cdiv(a, b):
    return -(-a // b)


def _round_up(x, m):
    return _cdiv(x, m) * m


# ----------------------------- Pallas kernel ---------------------------------
def _scatter_sum_kernel(bid_ref, feat_ref, out_ref, *, chunk):
    """Per-graph scatter-sum of node features via in-register one-hot matmul.

    bid_ref : (1, TILE)      int32   batch id per node (sentinel == B for padding)
    feat_ref: (TILE, Ftot)   bf16    merged node feature slab (zero-padded rows)
    out_ref : (B, Ftot)      f32     per-core partial aggregate (resident across
                                     the reduction grid axis)
    """
    step = pl.program_id(1)

    @pl.when(step == 0)
    def _init():
        out_ref[...] = jnp.zeros_like(out_ref)

    B, Ftot = out_ref.shape
    tile = feat_ref.shape[0]
    n_chunks = tile // chunk

    acc = jnp.zeros((B, Ftot), jnp.float32)
    for c in range(n_chunks):  # static chunk loop keeps the (B, chunk) mask vreg-sized
        ids = bid_ref[:, c * chunk:(c + 1) * chunk]                    # (1, chunk) int32
        gids = jax.lax.broadcasted_iota(jnp.int32, (B, chunk), 0)
        mask = (gids == ids).astype(feat_ref.dtype)                    # (B, chunk)
        # scatter(..., reduce='sum') over this chunk == one-hot matmul (MXU, f32 acc).
        acc = acc + jnp.dot(mask, feat_ref[c * chunk:(c + 1) * chunk, :],
                            preferred_element_type=jnp.float32)
    out_ref[...] += acc


# ------------------------------ host wrapper ----------------------------------
@functools.partial(
    jax.jit,
    static_argnames=("num_graphs", "hidden_dim", "node_tile", "num_cores", "chunk"))
def dock_guide_forward(protein_atom_feature, ligand_atom_feature,
                       batch_protein, batch_ligand, time_step, params,
                       *, num_graphs, hidden_dim, node_tile=2048, num_cores=2,
                       chunk=512):
    """Returns (num_graphs, 1) dock score, matching DockGuideNet3D.forward."""
    f32, bf16 = jnp.float32, jnp.bfloat16
    Np, Fp = protein_atom_feature.shape
    Nl, Fl = ligand_atom_feature.shape
    H, B = hidden_dim, num_graphs
    emb = H - 1                                   # node_indicator=True
    assert node_tile % chunk == 0

    # --- merged node stream --------------------------------------------------
    # Columns: [protein feats | ligand feats | protein-count 1 | ligand-count 1]
    Ftot = Fp + Fl + 2
    N = Np + Nl

    per_core = _cdiv(N, num_cores)
    eff_tile = max(chunk, min(node_tile, _round_up(per_core, chunk)))
    nt_c = max(1, _cdiv(per_core, eff_tile))      # node tiles per core
    npad = num_cores * nt_c * eff_tile

    feat = jnp.zeros((npad, Ftot), bf16)
    feat = feat.at[:Np, :Fp].set(protein_atom_feature.astype(bf16))
    feat = feat.at[:Np, Fp + Fl].set(1.0)                     # protein count column
    feat = feat.at[Np:N, Fp:Fp + Fl].set(ligand_atom_feature.astype(bf16))
    feat = feat.at[Np:N, Fp + Fl + 1].set(1.0)                # ligand count column

    # Batch ids; padded slots get the sentinel B (matches no graph).  The caller
    # must pass num_graphs >= max(batch ids)+1 or the sentinel would collide.
    bid = jnp.full((1, npad), B, jnp.int32)
    bid = bid.at[0, :Np].set(batch_protein.astype(jnp.int32))
    bid = bid.at[0, Np:N].set(batch_ligand.astype(jnp.int32))

    # --- Pallas: per-core partial scatter-sums -------------------------------
    agg_parts = pl.pallas_call(
        functools.partial(_scatter_sum_kernel, chunk=chunk),
        out_shape=jax.ShapeDtypeStruct((num_cores, B, Ftot), f32),
        grid_spec=pltpu.PrefetchScalarGridSpec(
            num_scalar_prefetch=0,
            grid=(num_cores, nt_c),
            in_specs=[
                pl.BlockSpec((1, eff_tile), lambda c, i: (0, c * nt_c + i)),
                pl.BlockSpec((eff_tile, Ftot), lambda c, i: (c * nt_c + i, 0)),
            ],
            out_specs=pl.BlockSpec((None, B, Ftot), lambda c, i: (c, 0, 0)),
        ),
        compiler_params=pltpu.CompilerParams(
            dimension_semantics=("parallel", "arbitrary")),   # cores x node reduction
    )(bid, feat)
    agg = jnp.sum(agg_parts.astype(f32), axis=0)              # combine core partials

    # --- tiny MLP head in plain JAX (O(B*H^2) flops) --------------------------
    agg_p = agg[:, :Fp]
    agg_l = agg[:, Fp:Fp + Fl]
    cnt_p = agg[:, Fp + Fl:Fp + Fl + 1]
    cnt_l = agg[:, Fp + Fl + 1:Fp + Fl + 2]

    wp = params["wp"].astype(f32)                 # (Fp, emb)
    bp = params["bp"].astype(f32)                 # (emb,)
    wl = params["wl"].astype(f32)                 # (Fl+1, emb)
    bl = params["bl"].astype(f32)                 # (emb,)
    wl_main = wl[:Fl]
    wt_row = wl[Fl:Fl + 1]                        # (1, emb)  'simple' time-feature row

    tnorm = (time_step.astype(f32) / NUM_TIMESTEPS).reshape(B, 1)

    # Embedding Linears commute with the scatter-sum while refine_net is identity;
    # biases / time column / node indicator become counts-per-graph terms.
    h_emb = (agg_p @ wp + agg_l @ wl_main
             + cnt_p * bp[None, :] + cnt_l * bl[None, :]
             + (cnt_l * tnorm) * wt_row)
    h = jnp.concatenate([h_emb, cnt_l], axis=-1)  # node-indicator column (B, H)

    # dock_inference: Linear -> ShiftedSoftplus -> Linear
    y = h @ params["w1"].astype(f32) + params["b1"].astype(f32)
    y = jax.nn.softplus(y) - jnp.log(2.0)
    return y @ params["w2"].astype(f32) + params["b2"].astype(f32)


# ----------------------- pure-JAX reference (f32) ------------------------------
def reference_forward(protein_atom_feature, ligand_atom_feature,
                      batch_protein, batch_ligand, time_step, params,
                      *, num_graphs):
    f32 = jnp.float32
    t_norm = (time_step.astype(f32) / NUM_TIMESTEPS)[batch_ligand][:, None]
    lfeat = jnp.concatenate([ligand_atom_feature.astype(f32), t_norm], axis=-1)
    h_l = lfeat @ params["wl"] + params["bl"]
    h_l = jnp.concatenate([h_l, jnp.ones((h_l.shape[0], 1), f32)], axis=-1)
    h_p = protein_atom_feature.astype(f32) @ params["wp"] + params["bp"]
    h_p = jnp.concatenate([h_p, jnp.zeros((h_p.shape[0], 1), f32)], axis=-1)
    # refine_net (EGNN) treated as identity (no source available).
    agg = (jax.ops.segment_sum(h_p, batch_protein, num_segments=num_graphs)
           + jax.ops.segment_sum(h_l, batch_ligand, num_segments=num_graphs))
    y = agg @ params["w1"] + params["b1"]
    y = jax.nn.softplus(y) - jnp.log(2.0)
    return y @ params["w2"] + params["b2"]


# --------------------------- parameter initialization --------------------------
def init_params(key, protein_feat_dim, ligand_feat_dim, hidden_dim):
    emb_dim = hidden_dim - 1  # node_indicator=True
    ks = jax.random.split(key, 8)
    f32 = jnp.float32

    def lin(kw, kb, fan_in, fan_out):
        bound = 1.0 / np.sqrt(fan_in)
        w = jax.random.uniform(kw, (fan_in, fan_out), f32, -bound, bound)
        b = jax.random.uniform(kb, (fan_out,), f32, -bound, bound)
        return w, b

    wp, bp = lin(ks[0], ks[1], protein_feat_dim, emb_dim)        # protein_atom_emb
    wl, bl = lin(ks[2], ks[3], ligand_feat_dim + 1, emb_dim)     # ligand_atom_emb ('simple' time)
    w1, b1 = lin(ks[4], ks[5], hidden_dim, hidden_dim)           # dock_inference[0]
    w2, b2 = lin(ks[6], ks[7], hidden_dim, 1)                    # dock_inference[2]
    return dict(wp=wp, bp=bp, wl=wl, bl=bl, w1=w1, b1=b1, w2=w2, b2=b2)


# ------------------------------------ main -------------------------------------
if __name__ == "__main__":
    key = jax.random.PRNGKey(0)
    B = 2                      # graphs in the batch
    Np, Nl = 32, 16            # protein / ligand atoms (total over the batch)
    Fp, Fl = 16, 8             # protein / ligand atom feature dims
    H = 32                     # hidden_dim

    k_feat_p, k_feat_l, k_pos_p, k_pos_l, k_t, k_par = jax.random.split(key, 6)

    protein_atom_feature = jax.random.normal(k_feat_p, (Np, Fp), jnp.float32)
    ligand_atom_feature = jax.nn.one_hot(
        jax.random.randint(k_feat_l, (Nl,), 0, Fl), Fl, dtype=jnp.float32)
    protein_pos = jax.random.normal(k_pos_p, (Np, 3), jnp.float32)   # unused (EGNN skipped)
    ligand_pos = jax.random.normal(k_pos_l, (Nl, 3), jnp.float32)    # unused (EGNN skipped)
    batch_protein = jnp.repeat(jnp.arange(B, dtype=jnp.int32), Np // B)
    batch_ligand = jnp.repeat(jnp.arange(B, dtype=jnp.int32), Nl // B)
    time_step = jax.random.randint(k_t, (B,), 0, NUM_TIMESTEPS).astype(jnp.int32)

    # Sentinel-id safety check (the kernel pads with id == num_graphs).
    assert int(jnp.max(batch_protein)) < B and int(jnp.max(batch_ligand)) < B

    params = init_params(k_par, Fp, Fl, H)

    out = dock_guide_forward(protein_atom_feature, ligand_atom_feature,
                             batch_protein, batch_ligand, time_step, params,
                             num_graphs=B, hidden_dim=H)
    out = jax.block_until_ready(out)

    ref = reference_forward(protein_atom_feature, ligand_atom_feature,
                            batch_protein, batch_ligand, time_step, params,
                            num_graphs=B)

    assert out.shape == (B, 1) and bool(jnp.all(jnp.isfinite(out)))
    # bf16 node-feature path with exact f32 accumulation -> generous tolerance vs
    # the f32 reference (continuous protein feats see ~0.4% quantization).
    assert bool(jnp.allclose(out, ref, rtol=5e-2, atol=5e-2)), (out, ref)
    print("KERNEL_OK")
</pallas_src>

<mosaic_0001>
module attributes {stable_mosaic.version = 11 : i64} {
  func.func @_scatter_sum_kernel(%arg0: i32, %arg1: i32, %arg2: memref<1x512xi32, #tpu.memory_space<vmem>>, %arg3: memref<512x26xbf16, #tpu.memory_space<vmem>>, %arg4: memref<1x2x26xf32, #tpu.memory_space<vmem>>) attributes {dimension_semantics = [#tpu.dimension_semantics<parallel>, #tpu.dimension_semantics<arbitrary>], iteration_bounds = array<i64: 2, 1>, scalar_prefetch = 0 : i64, scratch_operands = 0 : i64, tpu.core_type = #tpu.core_type<tc>, window_params = [{transform_indices = @transform_0, window_bounds = array<i64: 1, 512>}, {transform_indices = @transform_1, window_bounds = array<i64: 512, 26>}, {transform_indices = @transform_2, window_bounds = array<i64: 1, 2, 26>}]} {
    %c0_i32 = arith.constant 0 : i32
    %0 = arith.cmpi eq, %arg1, %c0_i32 : i32
    %1 = arith.extui %0 : i1 to i32
    %c0_i32_0 = arith.constant 0 : i32
    %2 = arith.cmpi ne, %1, %c0_i32_0 : i32
    scf.if %2 {
      %cst_11 = arith.constant 0.000000e+00 : f32
      %20 = vector.broadcast %cst_11 : f32 to vector<2x26xf32>
      %c0_12 = arith.constant 0 : index
      %c0_13 = arith.constant 0 : index
      %c0_14 = arith.constant 0 : index
      %21 = vector.load %arg4[%c0_12, %c0_13, %c0_14] : memref<1x2x26xf32, #tpu.memory_space<vmem>>, vector<1x2x26xf32>
      %22 = vector.shape_cast %21 : vector<1x2x26xf32> to vector<2x26xf32>
      %23 = vector.shape_cast %20 : vector<2x26xf32> to vector<1x2x26xf32>
      tpu.vector_store %arg4[%c0_12, %c0_13, %c0_14], %23 {strides = array<i32>} : memref<1x2x26xf32, #tpu.memory_space<vmem>>, vector<1x2x26xf32>,
    } else {
    }
    %cst = arith.constant 0.000000e+00 : f32
    %3 = vector.broadcast %cst : f32 to vector<2x26xf32>
    %c0 = arith.constant 0 : index
    %c0_1 = arith.constant 0 : index
    %4 = vector.load %arg2[%c0, %c0_1] : memref<1x512xi32, #tpu.memory_space<vmem>>, vector<1x512xi32>
    %5 = tpu.iota {dimensions = array<i32: 0>} : vector<2x512xi32>
    %6 = vector.broadcast %4 : vector<1x512xi32> to vector<2x512xi32>
    %7 = arith.cmpi eq, %5, %6 : vector<2x512xi32>
    %8 = arith.extui %7 : vector<2x512xi1> to vector<2x512xi32>
    %9 = arith.sitofp %8 : vector<2x512xi32> to vector<2x512xf32>
    %10 = arith.truncf %9 : vector<2x512xf32> to vector<2x512xbf16>
    %c0_2 = arith.constant 0 : index
    %c0_3 = arith.constant 0 : index
    %11 = vector.load %arg3[%c0_2, %c0_3] : memref<512x26xbf16, #tpu.memory_space<vmem>>, vector<512x26xbf16>
    %cst_4 = arith.constant dense<0.000000e+00> : vector<2x26xf32>
    %12 = tpu.matmul %10, %11, %cst_4 {dimension_numbers = #tpu.dot_dimension_numbers<[1], [0], [0], [1], [0, 0, 1, 1], [], []>} : vector<2x512xbf16>, vector<512x26xbf16>, vector<2x26xf32> -> vector<2x26xf32>
    %13 = arith.addf %3, %12 : vector<2x26xf32>
    %c0_5 = arith.constant 0 : index
    %c0_6 = arith.constant 0 : index
    %c0_7 = arith.constant 0 : index
    %14 = vector.load %arg4[%c0_5, %c0_6, %c0_7] : memref<1x2x26xf32, #tpu.memory_space<vmem>>, vector<1x2x26xf32>
    %15 = vector.shape_cast %14 : vector<1x2x26xf32> to vector<2x26xf32>
    %16 = arith.addf %15, %13 : vector<2x26xf32>
    %c0_8 = arith.constant 0 : index
    %c0_9 = arith.constant 0 : index
    %c0_10 = arith.constant 0 : index
    %17 = vector.load %arg4[%c0_8, %c0_9, %c0_10] : memref<1x2x26xf32, #tpu.memory_space<vmem>>, vector<1x2x26xf32>
    %18 = vector.shape_cast %17 : vector<1x2x26xf32> to vector<2x26xf32>
    %19 = vector.shape_cast %16 : vector<2x26xf32> to vector<1x2x26xf32>
    tpu.vector_store %arg4[%c0_8, %c0_9, %c0_10], %19 {strides = array<i32>} : memref<1x2x26xf32, #tpu.memory_space<vmem>>, vector<1x2x26xf32>,
    return
  }
  func.func @transform_0(%arg0: i32, %arg1: i32) -> (i32, i32) {
    %c1_i32 = arith.constant 1 : i32
    %0 = arith.muli %arg0, %c1_i32 : i32
    %1 = arith.addi %0, %arg1 : i32
    %c0_i32 = arith.constant 0 : i32
    %c0_i32_0 = arith.constant 0 : i32
    return %c0_i32, %1 : i32, i32
  }
  func.func @transform_1(%arg0: i32, %arg1: i32) -> (i32, i32) {
    %c1_i32 = arith.constant 1 : i32
    %0 = arith.muli %arg0, %c1_i32 : i32
    %1 = arith.addi %0, %arg1 : i32
    %c0_i32 = arith.constant 0 : i32
    %c0_i32_0 = arith.constant 0 : i32
    return %1, %c0_i32 : i32, i32
  }
  func.func @transform_2(%arg0: i32, %arg1: i32) -> (i32, i32, i32) {
    %c0_i32 = arith.constant 0 : i32
    %c0_i32_0 = arith.constant 0 : i32
    %c0_i32_1 = arith.constant 0 : i32
    return %arg0, %c0_i32, %c0_i32_0 : i32, i32, i32
  }
}

</mosaic_0001>

<llo_original>
// kernel: dock_guide_forward.1
$region0: #{dock_guide_forward.1}
  #allocation0 [shape = 'u32[]', space=smem, size = 0x4, offset = 0x4, fixed_abs, tag = 'smem constant byte address 0x4 - core index']
  #allocation1 [shape = 'u32[144,128]{1,0:T(1,128)}', space=vmem, size = 0x12000, scoped, tag = 'internal scratch']
  %s0 = inlined_call_operand.vmem [shape: s32[1,1024], index: 0, kind: input, shape index: {}]
  %s1 = inlined_call_operand.vmem [shape: bf16[1024,26], index: 1, kind: input, shape index: {}]
  %s2 = inlined_call_operand.vmem [shape: f32[2,2,26], index: 2, kind: output, shape index: {}]
  %s3 = sld [smem:[#allocation0]]
  $region45: #{dock_guide_forward.1} parent=0
    _
  %s5 = ssub.s32 1, %s3
  %s6 = scalar_select 0, %s5, %s3
  loop: start=0, step=1, limit=4
  $region2: #{dock_guide_forward.1} parent=0 // loop_pre_header
    _
  $region3: #{dock_guide_forward.1} parent=0 // loop_header
    %s8 = sphi 0, %s12
    %p9 = scmp.ge.s32.totalorder %s8, 4
    %s15 = sphi 0, %s27
    %s16 = sphi 0, %s23
    %s17 = sphi 0, %s15
    %s18 = sphi 0, %s16
    %s19 = sphi 0, %s17
    %s20 = sphi 0, %s18
    %s32 = sphi 0, %s34
    %s35 = sphi 0, %s32
    %s36 = sphi 0, %s35
    %s52 = sphi 0, %s36
    %s60 = sphi 0, %s62
    %s63 = sphi 0, %s60
    %s64 = sphi 0, %s63
    %s80 = sphi 0, %s64
    %s86 = sphi 0, %s88
    %s89 = sphi 0, %s86
    %s90 = sphi 0, %s89
    %s106 = sphi 0, %s90
  $region4: #{dock_guide_forward.1} parent=0 // loop_header_branch
    %11 = sbr.rel (%p9) target = $region8
  $region5: #{dock_guide_forward.1} parent=0 // loop_body
    %s13 = ssub.s32 %s8, 1
    %s14 = ssub.s32 %s8, 2
    %s21 = sadd.s32 1, %s16
    %p22 = scmp.ge.s32.totalorder %s21, 1
    %s23 = scalar_select %p22, 0, %s21
    %s24 = sadd.s32 1, %s15
    %s25 = scalar_select %p22, %s24, %s15
    %p26 = scmp.ge.s32.totalorder %s25, 2
    %s27 = scalar_select %p26, 0, %s25
    %s28 = sadd.s32 %s15, %s16
    %s29 = sadd.s32 %s27, %s23
    %s30 = ssub.s32 %s28, %s29
    %p31 = scmp.eq.s32.totalorder %s30, 0
    %s33 = sadd.s32 %s32, 1
    %s34 = scalar_select %p31, %s32, %s33
    %p37 = pneg %p31
    %p38 = scmp.eq.s32.totalorder %s8, 1
    %p39 = por %p37, %p38
    %p40 = scmp.ne.s32.totalorder %s32, %s35
    %p41 = scmp.eq.s32.totalorder %s8, 0
    %p42 = por %p40, %p41
    %p43 = scmp.ne.s32.totalorder %s32, %s35
    %p44 = scmp.eq.s32.totalorder %s13, 1
    %p45 = por %p43, %p44
    %p46 = scmp.ne.s32.totalorder %s35, %s36
    %p47 = scmp.eq.s32.totalorder %s13, 0
    %p48 = por %p46, %p47
    %p49 = scmp.ne.s32.totalorder %s35, %s36
    %p50 = scmp.eq.s32.totalorder %s14, 1
    %p51 = por %p49, %p50
    %p53 = scmp.ne.s32.totalorder %s36, %s52
    %p54 = scmp.eq.s32.totalorder %s14, 0
    %p55 = por %p53, %p54
    %s56 = sadd.s32 %s15, %s16
    %s57 = sadd.s32 %s27, %s23
    %s58 = ssub.s32 %s56, %s57
    %p59 = scmp.eq.s32.totalorder %s58, 0
    %s61 = sadd.s32 %s60, 1
    %s62 = scalar_select %p59, %s60, %s61
    %p65 = pneg %p59
    %p66 = scmp.eq.s32.totalorder %s8, 1
    %p67 = por %p65, %p66
    %p68 = scmp.ne.s32.totalorder %s60, %s63
    %p69 = scmp.eq.s32.totalorder %s8, 0
    %p70 = por %p68, %p69
    %p71 = scmp.ne.s32.totalorder %s60, %s63
    %p72 = scmp.eq.s32.totalorder %s13, 1
    %p73 = por %p71, %p72
    %p74 = scmp.ne.s32.totalorder %s63, %s64
    %p75 = scmp.eq.s32.totalorder %s13, 0
    %p76 = por %p74, %p75
    %p77 = scmp.ne.s32.totalorder %s63, %s64
    %p78 = scmp.eq.s32.totalorder %s14, 1
    %p79 = por %p77, %p78
    %p81 = scmp.ne.s32.totalorder %s64, %s80
    %p82 = scmp.eq.s32.totalorder %s14, 0
    %p83 = por %p81, %p82
    %s84 = ssub.s32 %s15, %s27
    %p85 = scmp.eq.s32.totalorder %s84, 0
    %s87 = sadd.s32 %s86, 1
    %s88 = scalar_select %p85, %s86, %s87
    %p91 = pneg %p85
    %p92 = scmp.eq.s32.totalorder %s8, 1
    %p93 = por %p91, %p92
    %p94 = scmp.ne.s32.totalorder %s86, %s89
    %p95 = scmp.eq.s32.totalorder %s8, 0
    %p96 = por %p94, %p95
    %p97 = scmp.ne.s32.totalorder %s86, %s89
    %p98 = scmp.eq.s32.totalorder %s13, 1
    %p99 = por %p97, %p98
    %p100 = scmp.ne.s32.totalorder %s89, %s90
    %p101 = scmp.eq.s32.totalorder %s13, 0
    %p102 = por %p100, %p101
    %p103 = scmp.ne.s32.totalorder %s89, %s90
    %p104 = scmp.eq.s32.totalorder %s14, 1
    %p105 = por %p103, %p104
    %p107 = scmp.ne.s32.totalorder %s90, %s106
    %p108 = scmp.eq.s32.totalorder %s14, 0
    %p109 = por %p107, %p108
    %p110 = scmp.le.s32.totalorder 1, %s8
    %p111 = scmp.lt.s32.totalorder %s8, 3
    %p112 = pnand %p110, %p111
    %p113 = pneg %p112
    // Predicated region
    $region9: #{dock_guide_forward.1} parent=5 // pred_check
      _
    $region10: #{dock_guide_forward.1} parent=5 // pred_check_branch
      %115 = sbr.rel (%p112) target = $region12
    $region11: #{dock_guide_forward.1} parent=5 // pred_region
      %s116 = ssub.s32 %s8, 1
    $region12: #{dock_guide_forward.1} parent=5 // pred_fallthru
      _
    %p117 = scmp.lt.s32.totalorder %s8, 2
    // Predicated region
    $region13: #{dock_guide_forward.1} parent=5 // pred_check
      %p118 = pneg %p117
    $region14: #{dock_guide_forward.1} parent=5 // pred_check_branch
      %120 = sbr.rel (%p118) target = $region16
    $region15: #{dock_guide_forward.1} parent=5 // pred_region
      // Predicated region
      $region17: #{dock_guide_forward.1} parent=15 // pred_check
        %p121 = pneg %p42
      $region18: #{dock_guide_forward.1} parent=15 // pred_check_branch
        %123 = sbr.rel (%p121) target = $region20
      $region19: #{dock_guide_forward.1} parent=15 // pred_region
        %s124 = sadd.s32 %s15, %s16
        %s125 = smul.u32 4, %s124
        %p126 = scmp.lt.s32.totalorder %s125, 7
        %s127 = scalar_select %p126, %s125, 7
        %s128 = scalar_lea.vmem %s0, %s127
        %s129 = sadd.s32 %s15, %s16
        %s130 = smul.u32 4, %s129
      $region20: #{dock_guide_forward.1} parent=15 // pred_fallthru
        _
      // Predicated region
      $region21: #{dock_guide_forward.1} parent=15 // pred_check
        %p131 = pneg %p70
      $region22: #{dock_guide_forward.1} parent=15 // pred_check_branch
        %133 = sbr.rel (%p131) target = $region24
      $region23: #{dock_guide_forward.1} parent=15 // pred_region
        %s134 = sadd.s32 %s15, %s16
        %s135 = smul.u32 64, %s134
        %p136 = scmp.lt.s32.totalorder %s135, 127
        %s137 = scalar_select %p136, %s135, 127
        %s138 = smul.addr %s137, 4
        %s139 = scalar_lea.vmem %s1, %s138
        %s140 = sadd.s32 %s15, %s16
        %s141 = smul.u32 64, %s140
      $region24: #{dock_guide_forward.1} parent=15 // pred_fallthru
        _
    $region16: #{dock_guide_forward.1} parent=5 // pred_fallthru
      _
    %p142 = scmp.le.s32.totalorder 1, %s8
    %p143 = scmp.lt.s32.totalorder %s8, 3
    %p144 = pnand %p142, %p143
    %p145 = pneg %p144
    // Predicated region
    $region25: #{dock_guide_forward.1} parent=5 // pred_check
      _
    $region26: #{dock_guide_forward.1} parent=5 // pred_check_branch
      %147 = sbr.rel (%p144) target = $region28
    $region27: #{dock_guide_forward.1} parent=5 // pred_region
      %s148 = ssub.s32 %s8, 1
      %s149 = sadd.s32 %s17, %s18
      %s150 = smul.u32 4, %s149
      %p151 = scmp.lt.s32.totalorder %s150, 7
      %s152 = scalar_select %p151, %s150, 7
      %s153 = scalar_lea.vmem %s0, %s152
      %p154 = pneg %p48
      %p155 = pneg %p45
      %s156 = sadd.s32 %s17, %s18
      %s157 = smul.u32 64, %s156
      %p158 = scmp.lt.s32.totalorder %s157, 127
      %s159 = scalar_select %p158, %s157, 127
      %s160 = smul.addr %s159, 4
      %s161 = scalar_lea.vmem %s1, %s160
      %p162 = pneg %p76
      %p163 = pneg %p73
      %p164 = pneg %p102
      %p165 = pneg %p99
      %p166 = scmp.lt.s32.totalorder %s17, 1
      %s167 = scalar_select %p166, %s17, 1
      %s168 = smul.addr %s167, 2
      %s169 = scalar_lea.vmem %s2, %s168
      %s170 = sadd.s32 %s17, %s18
      %s171 = smul.u32 4, %s170
      %p172 = scmp.lt.s32.totalorder %s171, 7
      %s173 = scalar_select %p172, %s171, 7
      %s174 = scalar_lea.vmem %s0, %s173
      %s175 = sadd.s32 %s17, %s18
      %s176 = smul.u32 4, %s175
      %s177 = sadd.s32 %s17, %s18
      %s178 = smul.u32 64, %s177
      %p179 = scmp.lt.s32.totalorder %s178, 127
      %s180 = scalar_select %p179, %s178, 127
      %s181 = smul.addr %s180, 4
      %s182 = scalar_lea.vmem %s1, %s181
      %s183 = sadd.s32 %s17, %s18
      %s184 = smul.u32 64, %s183
      %p185 = scmp.lt.s32.totalorder %s17, 1
      %s186 = scalar_select %p185, %s17, 1
      %s187 = smul.addr %s186, 2
      %s188 = scalar_lea.vmem %s2, %s187
      %p190 = scmp.eq.s32.totalorder %s18, 0
      // Predicated region
      $region29: #{dock_guide_forward.1} parent=27 // pred_check
        %p191 = pneg %p190
      $region30: #{dock_guide_forward.1} parent=27 // pred_check_branch
        %193 = sbr.rel (%p191) target = $region32
      $region31: #{dock_guide_forward.1} parent=27 // pred_region
        %vm194 = vcmask 205824
        %195 = vst.msk [vmem:[%s188] sm:$0x3] %vm194, 0.0
      $region32: #{dock_guide_forward.1} parent=27 // pred_fallthru
        _
      %v196 = vld [vmem:[%s174] sm:$0xf]
      %v197 = vlaneseq
      %v198 = vshrl.u32 %v197, 7
      %v199 = vlaneseq
      %v200 = vshrl.u32 %v199, 7
      %v201 = vsub.s32 0, %v200
      %v202 = vrot.slane %v196, %v201
      %v203 = vlaneseq
      %v204 = vshrl.u32 %v203, 7
      %v205 = vsub.s32 1, %v204
      %v206 = vrot.slane %v196, %v205
      %v207 = vlaneseq
      %v208 = vshrl.u32 %v207, 7
      %v209 = vsub.s32 2, %v208
      %v210 = vrot.slane %v196, %v209
      %v211 = vlaneseq
      %v212 = vshrl.u32 %v211, 7
      %v213 = vsub.s32 3, %v212
      %v214 = vrot.slane %v196, %v213
      %vm215 = vcmp.eq.s32.totalorder %v198, %v202
      %vm216 = vcmp.eq.s32.totalorder %v198, %v206
      %vm217 = vcmp.eq.s32.totalorder %v198, %v210
      %vm218 = vcmp.eq.s32.totalorder %v198, %v214
      %v219 = vsel %vm215, 1, 0
      %v220 = vsel %vm216, 1, 0
      %v221 = vsel %vm217, 1, 0
      %v222 = vsel %vm218, 1, 0
      %v223 = vcvt.s32.f32 %v219
      %v224 = vcvt.s32.f32 %v220
      %v225 = vcvt.s32.f32 %v221
      %v226 = vcvt.s32.f32 %v222
      %v227 = vpack.c.bf16 %v223, %v223
      %v228 = vpack.c.bf16 %v224, %v224
      %v229 = vpack.c.bf16 %v225, %v225
      %v230 = vpack.c.bf16 %v226, %v226
      %v231 = vld [vmem:[%s182] sm:$0xf]
      %v232 = vld [vmem:[%s182 + $0x4] sm:$0xf]
      %v233 = vld [vmem:[%s182 + $0x8] sm:$0xf]
      %v234 = vld [vmem:[%s182 + $0xc] sm:$0xf]
      %v235 = vld [vmem:[%s182 + $0x10] sm:$0xf]
      %v236 = vld [vmem:[%s182 + $0x14] sm:$0xf]
      %v237 = vld [vmem:[%s182 + $0x18] sm:$0xf]
      %v238 = vld [vmem:[%s182 + $0x1c] sm:$0xf]
      %v239 = vld [vmem:[%s182 + $0x20] sm:$0xf]
      %v240 = vld [vmem:[%s182 + $0x24] sm:$0xf]
      %v241 = vld [vmem:[%s182 + $0x28] sm:$0xf]
      %v242 = vld [vmem:[%s182 + $0x2c] sm:$0xf]
      %v243 = vld [vmem:[%s182 + $0x30] sm:$0xf]
      %v244 = vld [vmem:[%s182 + $0x34] sm:$0xf]
      %v245 = vld [vmem:[%s182 + $0x38] sm:$0xf]
      %v246 = vld [vmem:[%s182 + $0x3c] sm:$0xf]
      %v247 = vld [vmem:[%s182 + $0x40] sm:$0xf]
      %v248 = vld [vmem:[%s182 + $0x44] sm:$0xf]
      %v249 = vld [vmem:[%s182 + $0x48] sm:$0xf]
      %v250 = vld [vmem:[%s182 + $0x4c] sm:$0xf]
      %v251 = vld [vmem:[%s182 + $0x50] sm:$0xf]
      %v252 = vld [vmem:[%s182 + $0x54] sm:$0xf]
      %v253 = vld [vmem:[%s182 + $0x58] sm:$0xf]
      %v254 = vld [vmem:[%s182 + $0x5c] sm:$0xf]
      %v255 = vld [vmem:[%s182 + $0x60] sm:$0xf]
      %v256 = vld [vmem:[%s182 + $0x64] sm:$0xf]
      %v257 = vld [vmem:[%s182 + $0x68] sm:$0xf]
      %v258 = vld [vmem:[%s182 + $0x6c] sm:$0xf]
      %v259 = vld [vmem:[%s182 + $0x70] sm:$0xf]
      %v260 = vld [vmem:[%s182 + $0x74] sm:$0xf]
      %v261 = vld [vmem:[%s182 + $0x78] sm:$0xf]
      %v262 = vld [vmem:[%s182 + $0x7c] sm:$0xf]
      %v263 = vld [vmem:[%s182 + $0x80] sm:$0xf]
      %v264 = vld [vmem:[%s182 + $0x84] sm:$0xf]
      %v265 = vld [vmem:[%s182 + $0x88] sm:$0xf]
      %v266 = vld [vmem:[%s182 + $0x8c] sm:$0xf]
      %v267 = vld [vmem:[%s182 + $0x90] sm:$0xf]
      %v268 = vld [vmem:[%s182 + $0x94] sm:$0xf]
      %v269 = vld [vmem:[%s182 + $0x98] sm:$0xf]
      %v270 = vld [vmem:[%s182 + $0x9c] sm:$0xf]
      %v271 = vld [vmem:[%s182 + $0xa0] sm:$0xf]
      %v272 = vld [vmem:[%s182 + $0xa4] sm:$0xf]
      %v273 = vld [vmem:[%s182 + $0xa8] sm:$0xf]
      %v274 = vld [vmem:[%s182 + $0xac] sm:$0xf]
      %v275 = vld [vmem:[%s182 + $0xb0] sm:$0xf]
      %v276 = vld [vmem:[%s182 + $0xb4] sm:$0xf]
      %v277 = vld [vmem:[%s182 + $0xb8] sm:$0xf]
      %v278 = vld [vmem:[%s182 + $0xbc] sm:$0xf]
      %v279 = vld [vmem:[%s182 + $0xc0] sm:$0xf]
      %v280 = vld [vmem:[%s182 + $0xc4] sm:$0xf]
      %v281 = vld [vmem:[%s182 + $0xc8] sm:$0xf]
      %v282 = vld [vmem:[%s182 + $0xcc] sm:$0xf]
      %v283 = vld [vmem:[%s182 + $0xd0] sm:$0xf]
      %v284 = vld [vmem:[%s182 + $0xd4] sm:$0xf]
      %v285 = vld [vmem:[%s182 + $0xd8] sm:$0xf]
      %v286 = vld [vmem:[%s182 + $0xdc] sm:$0xf]
      %v287 = vld [vmem:[%s182 + $0xe0] sm:$0xf]
      %v288 = vld [vmem:[%s182 + $0xe4] sm:$0xf]
      %v289 = vld [vmem:[%s182 + $0xe8] sm:$0xf]
      %v290 = vld [vmem:[%s182 + $0xec] sm:$0xf]
      %v291 = vld [vmem:[%s182 + $0xf0] sm:$0xf]
      %v292 = vld [vmem:[%s182 + $0xf4] sm:$0xf]
      %v293 = vld [vmem:[%s182 + $0xf8] sm:$0xf]
      %v294 = vld [vmem:[%s182 + $0xfc] sm:$0xf]
      %v359 = vunpack.c.l.b16 %v231
      %v360 = vunpack.c.l.b16 %v232
      %v361 = vunpack.c.l.b16 %v233
      %v362 = vunpack.c.l.b16 %v234
      %v363 = vunpack.c.l.b16 %v235
      %v364 = vunpack.c.l.b16 %v236
      %v365 = vunpack.c.l.b16 %v237
      %v366 = vunpack.c.l.b16 %v238
      %v367 = vunpack.c.l.b16 %v239
      %v368 = vunpack.c.l.b16 %v240
      %v369 = vunpack.c.l.b16 %v241
      %v370 = vunpack.c.l.b16 %v242
      %v371 = vunpack.c.l.b16 %v243
      %v372 = vunpack.c.l.b16 %v244
      %v373 = vunpack.c.l.b16 %v245
      %v374 = vunpack.c.l.b16 %v246
      %v375 = vunpack.c.l.b16 %v247
      %v376 = vunpack.c.l.b16 %v248
      %v377 = vunpack.c.l.b16 %v249
      %v378 = vunpack.c.l.b16 %v250
      %v379 = vunpack.c.l.b16 %v251
      %v380 = vunpack.c.l.b16 %v252
      %v381 = vunpack.c.l.b16 %v253
      %v382 = vunpack.c.l.b16 %v254
      %v383 = vunpack.c.l.b16 %v255
      %v384 = vunpack.c.l.b16 %v256
      %v385 = vunpack.c.l.b16 %v257
      %v386 = vunpack.c.l.b16 %v258
      %v387 = vunpack.c.l.b16 %v259
      %v388 = vunpack.c.l.b16 %v260
      %v389 = vunpack.c.l.b16 %v261
      %v390 = vunpack.c.l.b16 %v262
      %v391 = vunpack.c.l.b16 %v263
      %v392 = vunpack.c.l.b16 %v264
      %v393 = vunpack.c.l.b16 %v265
      %v394 = vunpack.c.l.b16 %v266
      %v395 = vunpack.c.l.b16 %v267
      %v396 = vunpack.c.l.b16 %v268
      %v397 = vunpack.c.l.b16 %v269
      %v398 = vunpack.c.l.b16 %v270
      %v399 = vunpack.c.l.b16 %v271
      %v400 = vunpack.c.l.b16 %v272
      %v401 = vunpack.c.l.b16 %v273
      %v402 = vunpack.c.l.b16 %v274
      %v403 = vunpack.c.l.b16 %v275
      %v404 = vunpack.c.l.b16 %v276
      %v405 = vunpack.c.l.b16 %v277
      %v406 = vunpack.c.l.b16 %v278
      %v407 = vunpack.c.l.b16 %v279
      %v408 = vunpack.c.l.b16 %v280
      %v409 = vunpack.c.l.b16 %v281
      %v410 = vunpack.c.l.b16 %v282
      %v411 = vunpack.c.l.b16 %v283
      %v412 = vunpack.c.l.b16 %v284
      %v413 = vunpack.c.l.b16 %v285
      %v414 = vunpack.c.l.b16 %v286
      %v415 = vunpack.c.l.b16 %v287
      %v416 = vunpack.c.l.b16 %v288
      %v417 = vunpack.c.l.b16 %v289
      %v418 = vunpack.c.l.b16 %v290
      %v419 = vunpack.c.l.b16 %v291
      %v420 = vunpack.c.l.b16 %v292
      %v421 = vunpack.c.l.b16 %v293
      %v422 = vunpack.c.l.b16 %v294
      %v423 = vpack.c.b16 %v360, %v359
      %v424 = vpack.c.b16 %v362, %v361
      %v425 = vpack.c.b16 %v364, %v363
      %v426 = vpack.c.b16 %v366, %v365
      %v427 = vpack.c.b16 %v368, %v367
      %v428 = vpack.c.b16 %v370, %v369
      %v429 = vpack.c.b16 %v372, %v371
      %v430 = vpack.c.b16 %v374, %v373
      %v431 = vpack.c.b16 %v376, %v375
      %v432 = vpack.c.b16 %v378, %v377
      %v433 = vpack.c.b16 %v380, %v379
      %v434 = vpack.c.b16 %v382, %v381
      %v435 = vpack.c.b16 %v384, %v383
      %v436 = vpack.c.b16 %v386, %v385
      %v437 = vpack.c.b16 %v388, %v387
      %v438 = vpack.c.b16 %v390, %v389
      %v439 = vpack.c.b16 %v392, %v391
      %v440 = vpack.c.b16 %v394, %v393
      %v441 = vpack.c.b16 %v396, %v395
      %v442 = vpack.c.b16 %v398, %v397
      %v443 = vpack.c.b16 %v400, %v399
      %v444 = vpack.c.b16 %v402, %v401
      %v445 = vpack.c.b16 %v404, %v403
      %v446 = vpack.c.b16 %v406, %v405
      %v447 = vpack.c.b16 %v408, %v407
      %v448 = vpack.c.b16 %v410, %v409
      %v449 = vpack.c.b16 %v412, %v411
      %v450 = vpack.c.b16 %v414, %v413
      %v451 = vpack.c.b16 %v416, %v415
      %v452 = vpack.c.b16 %v418, %v417
      %v453 = vpack.c.b16 %v420, %v419
      %v454 = vpack.c.b16 %v422, %v421
      %487 = vmatprep.subr.bf16.mxu0 0
      %488 = vmatpush1.bf16.msra.mxu0 %v423
      %489 = vmatprep.subr.bf16.mxu0 0
      %490 = vmatpush1.bf16.msra.mxu0 %v424
      %491 = vmatprep.subr.bf16.mxu0 0
      %492 = vmatpush1.bf16.msra.mxu0 %v425
      %493 = vmatprep.subr.bf16.mxu0 0
      %494 = vmatpush1.bf16.msra.mxu0 %v426
      %495 = vmatprep.subr.bf16.mxu0 0
      %496 = vmatpush1.bf16.msra.mxu0 %v427
      %497 = vmatprep.subr.bf16.mxu0 0
      %498 = vmatpush1.bf16.msra.mxu0 %v428
      %499 = vmatprep.subr.bf16.mxu0 0
      %500 = vmatpush1.bf16.msra.mxu0 %v429
      %501 = vmatprep.subr.bf16.mxu0 0
      %502 = vmatpush1.bf16.msra.mxu0 %v430
      %503 = vmatprep.subr.bf16.mxu0 0
      %504 = vmatpush1.bf16.msra.mxu0 %v431
      %505 = vmatprep.subr.bf16.mxu0 0
      %506 = vmatpush1.bf16.msra.mxu0 %v432
      %507 = vmatprep.subr.bf16.mxu0 0
      %508 = vmatpush1.bf16.msra.mxu0 %v433
      %509 = vmatprep.subr.bf16.mxu0 0
      %510 = vmatpush1.bf16.msra.mxu0 %v434
      %511 = vmatprep.subr.bf16.mxu0 0
      %512 = vmatpush1.bf16.msra.mxu0 %v435
      %513 = vmatprep.subr.bf16.mxu0 0
      %514 = vmatpush1.bf16.msra.mxu0 %v436
      %515 = vmatprep.subr.bf16.mxu0 0
      %516 = vmatpush1.bf16.msra.mxu0 %v437
      %517 = vmatprep.subr.bf16.mxu0 0
      %518 = vmatpush1.bf16.msra.mxu0 %v438
      %519 = vmatprep.mubr.bf16.mxu0 %v228
      %520 = vmatmul.mubr.bf16.gmra.mrb[0].mxu0 %v227
      %v521 = vpop.f32.mrb[0].mxu0
      %v522 = vadd.f32 0.0, %v521
      %v523 = vpop.f32.mrb[0].mxu0
      %v524 = vpop.f32.mrb[0].mxu0
      %v525 = vpop.f32.mrb[0].mxu0
      %526 = vdwg.mxu0
      %527 = vmatprep.subr.bf16.mxu0 0
      %528 = vmatpush1.bf16.msra.mxu0 %v439
      %529 = vmatprep.subr.bf16.mxu0 0
      %530 = vmatpush1.bf16.msra.mxu0 %v440
      %531 = vmatprep.subr.bf16.mxu0 0
      %532 = vmatpush1.bf16.msra.mxu0 %v441
      %533 = vmatprep.subr.bf16.mxu0 0
      %534 = vmatpush1.bf16.msra.mxu0 %v442
      %535 = vmatprep.subr.bf16.mxu0 0
      %536 = vmatpush1.bf16.msra.mxu0 %v443
      %537 = vmatprep.subr.bf16.mxu0 0
      %538 = vmatpush1.bf16.msra.mxu0 %v444
      %539 = vmatprep.subr.bf16.mxu0 0
      %540 = vmatpush1.bf16.msra.mxu0 %v445
      %541 = vmatprep.subr.bf16.mxu0 0
      %542 = vmatpush1.bf16.msra.mxu0 %v446
      %543 = vmatprep.subr.bf16.mxu0 0
      %544 = vmatpush1.bf16.msra.mxu0 %v447
      %545 = vmatprep.subr.bf16.mxu0 0
      %546 = vmatpush1.bf16.msra.mxu0 %v448
      %547 = vmatprep.subr.bf16.mxu0 0
      %548 = vmatpush1.bf16.msra.mxu0 %v449
      %549 = vmatprep.subr.bf16.mxu0 0
      %550 = vmatpush1.bf16.msra.mxu0 %v450
      %551 = vmatprep.subr.bf16.mxu0 0
      %552 = vmatpush1.bf16.msra.mxu0 %v451
      %553 = vmatprep.subr.bf16.mxu0 0
      %554 = vmatpush1.bf16.msra.mxu0 %v452
      %555 = vmatprep.subr.bf16.mxu0 0
      %556 = vmatpush1.bf16.msra.mxu0 %v453
      %557 = vmatprep.subr.bf16.mxu0 0
      %558 = vmatpush1.bf16.msra.mxu0 %v454
      %559 = vmatprep.mubr.bf16.mxu0 %v230
      %560 = vmatmul.mubr.bf16.gmra.mrb[0].mxu0 %v229
      %v561 = vpop.f32.mrb[0].mxu0
      %v562 = vadd.f32 %v522, %v561
      %v563 = vpop.f32.mrb[0].mxu0
      %v564 = vpop.f32.mrb[0].mxu0
      %v565 = vpop.f32.mrb[0].mxu0
      %566 = vdwg.mxu0
      %v567 = vld [vmem:[%s188] sm:$0x3]
      %v568 = vadd.f32 %v567, %v562
      %vm569 = vcmask 205824
      %570 = vst.msk [vmem:[%s188] sm:$0x3] %vm569, %v568
      %p571 = scmp.lt.s32.totalorder %s17, 1
      %s572 = scalar_select %p571, %s17, 1
      %s573 = smul.addr %s572, 2
      %s574 = scalar_lea.vmem %s2, %s573
      // Predicated region
      $region33: #{dock_guide_forward.1} parent=27 // pred_check
        %p575 = pneg %p99
      $region34: #{dock_guide_forward.1} parent=27 // pred_check_branch
        %577 = sbr.rel (%p575) target = $region36
      $region35: #{dock_guide_forward.1} parent=27 // pred_region
        _
      $region36: #{dock_guide_forward.1} parent=27 // pred_fallthru
        _
    $region28: #{dock_guide_forward.1} parent=5 // pred_fallthru
      _
    %p578 = scmp.le.s32.totalorder 2, %s8
    // Predicated region
    $region37: #{dock_guide_forward.1} parent=5 // pred_check
      %p579 = pneg %p578
    $region38: #{dock_guide_forward.1} parent=5 // pred_check_branch
      %581 = sbr.rel (%p579) target = $region40
    $region39: #{dock_guide_forward.1} parent=5 // pred_region
      %s582 = ssub.s32 %s8, 2
      // Predicated region
      $region41: #{dock_guide_forward.1} parent=39 // pred_check
        %p583 = pneg %p105
      $region42: #{dock_guide_forward.1} parent=39 // pred_check_branch
        %585 = sbr.rel (%p583) target = $region44
      $region43: #{dock_guide_forward.1} parent=39 // pred_region
        %p586 = scmp.lt.s32.totalorder %s19, 1
        %s587 = scalar_select %p586, %s19, 1
        %s588 = smul.addr %s587, 2
        %s589 = scalar_lea.vmem %s2, %s588
      $region44: #{dock_guide_forward.1} parent=39 // pred_fallthru
        _
    $region40: #{dock_guide_forward.1} parent=5 // pred_fallthru
      _
  $region6: #{dock_guide_forward.1} parent=0 // loop_footer
    %s12 = sadd.s32 1, %s8
  $region7: #{dock_guide_forward.1} parent=0 // loop_footer_branch
    %7 = sbr.rel target = $region3
  $region8: #{dock_guide_forward.1} parent=0 // loop_exit
    _

</llo_original>
